<compile_context>
chip_gen: v7x
topology: tpu7x:2x2x1
jax: 0.10.0
libtpu: 0.0.40
codegen_flags: <defaults>
</compile_context>

<pallas_src>
import jax
import jax.numpy as jnp
from jax.experimental import pallas as pl
from jax.experimental.pallas import tpu as pltpu

LANE = 128
SUBLANE = 8


def _round_up(x, m):
    return ((x + m - 1) // m) * m


def _cdiv(a, b):
    return -(-a // b)


def _pick_batch_tiling(B, max_tile, split_threshold):
    """Balanced batch tiles: minimal padding; >=2 (even) grid steps for large B (v7x 2 TCs)."""
    n_steps = max(1, _cdiv(B, max_tile))
    if B >= split_threshold and n_steps < 2:
        n_steps = 2                       # let both v7x TensorCores work
    if n_steps > 1 and n_steps % 2:
        n_steps += 1                      # even step count -> balanced megacore split
    tb = _round_up(_cdiv(B, n_steps), SUBLANE)
    return tb, n_steps


def make_tensor_network(weight_matrix, weight_matrix_block, bias, *,
                        compute_dtype=jnp.bfloat16, out_dtype=jnp.float32,
                        max_batch_tile=512, split_threshold=256):
    """One-time parameter preprocessing; returns (forward, forward_batched).

    weight_matrix: (D, D, T); weight_matrix_block: (T, 2D); bias: (T, 1).
    forward(e1, e2)         -> (T, 1) for (D, 1) columns (PyTorch-module-compatible).
    forward_batched(E1, E2) -> (B, T) for (B, D) row batches of graph pairs.
    """
    D, D2, T = weight_matrix.shape
    assert D == D2
    DD = D * D
    K = DD + 2 * D            # fused contraction length: bilinear + block term
    Tp = _round_up(T, LANE)   # lane-dense output / weight width

    # ---- parameter layout hoisted out of the per-call path (done exactly once) ----
    # Fused weight: rows [0, D*D) = W[i, j, :] (row index i*D + j), rows [D*D, D*D+2D) = Wb^T.
    w_aug = jnp.zeros((K, Tp), compute_dtype)
    w_aug = w_aug.at[:DD, :T].set(weight_matrix.reshape(DD, T).astype(compute_dtype))
    w_aug = w_aug.at[DD:, :T].set(weight_matrix_block.T.astype(compute_dtype))

    # One-hot selection matrix: a single exact MXU matmul builds BOTH lane-expanded factors:
    #   (e12 @ sel)[:, k]       = e1[:, k // D]   (each element repeated D times)
    #   (e12 @ sel)[:, DD + k]  = e2[:, k %  D]   (vector tiled D times)
    k_idx = jnp.arange(DD)
    sel = jnp.zeros((2 * D, 2 * DD), compute_dtype)
    sel = sel.at[k_idx // D, k_idx].set(1)
    sel = sel.at[D + (k_idx % D), DD + k_idx].set(1)

    bias_row = jnp.zeros((1, Tp), jnp.float32).at[:, :T].set(
        bias.reshape(1, T).astype(jnp.float32))

    def ntn_kernel(e12_ref, sel_ref, w_aug_ref, bias_ref, out_ref):
        """Scores one (tb,)-tile of graph pairs; all weights are grid-stationary in VMEM.

        e12_ref  : (tb, 2D)        cat(e1, e2) rows, compute dtype
        sel_ref  : (2D, 2*D*D)     one-hot factor-expansion matrix
        w_aug_ref: (D*D+2D, Tp)    fused bilinear + block weights, lane-padded
        bias_ref : (1, Tp)         f32 bias row
        out_ref  : (tb, Tp)        relu(bilinear + block + bias)
        """
        e12 = e12_ref[...]
        # Exact lane expansion of both outer-product factors: one MXU dot, no reshapes.
        expand = jnp.dot(e12, sel_ref[...], preferred_element_type=jnp.float32)
        e1_rep = expand[:, :DD]        # e1[b, k // D]
        e2_til = expand[:, DD:]        # e2[b, k %  D]
        # f32 VPU multiply (v5e has no bf16 VALU), then a single narrowing cast.
        fo = (e1_rep * e2_til).astype(compute_dtype)
        # Fused bilinear + block contraction; concat offset (D*D) is 128-lane aligned.
        lhs = jnp.concatenate([fo, e12], axis=1)                  # (tb, D*D + 2D)
        acc = jnp.dot(lhs, w_aug_ref[...], preferred_element_type=jnp.float32)
        out_ref[...] = jnp.maximum(acc + bias_ref[...], 0.0).astype(out_ref.dtype)

    @jax.jit
    def forward_batched(e1, e2):
        """e1, e2: (B, D) rows. Returns (B, T) similarity vectors (f32)."""
        B = e1.shape[0]
        tb, n_steps = _pick_batch_tiling(B, max_batch_tile, split_threshold)
        B_pad = tb * n_steps

        # Single cast + single concat in the wrapper; everything else lives in the kernel.
        e12 = jnp.concatenate([e1, e2], axis=1).astype(compute_dtype)
        if B_pad != B:
            e12 = jnp.pad(e12, ((0, B_pad - B), (0, 0)))

        out = pl.pallas_call(
            ntn_kernel,
            out_shape=jax.ShapeDtypeStruct((B_pad, Tp), out_dtype),
            grid=(n_steps,),
            in_specs=[
                pl.BlockSpec((tb, 2 * D), lambda i: (i, 0)),
                pl.BlockSpec((2 * D, 2 * DD), lambda i: (0, 0)),   # stationary
                pl.BlockSpec((K, Tp), lambda i: (0, 0)),           # stationary
                pl.BlockSpec((1, Tp), lambda i: (0, 0)),           # stationary
            ],
            out_specs=pl.BlockSpec((tb, Tp), lambda i: (i, 0)),
            compiler_params=pltpu.CompilerParams(
                dimension_semantics=("parallel",),     # batch tiles shard across v7x TCs
                vmem_limit_bytes=32 * 1024 * 1024),
        )(e12, sel, w_aug, bias_row)
        return out[:B, :T].astype(jnp.float32)

    def forward(embedding_1, embedding_2):
        """PyTorch-module-compatible single-pair forward: (D, 1), (D, 1) -> (T, 1)."""
        return forward_batched(embedding_1.T, embedding_2.T).T

    return forward, forward_batched


def xavier_uniform(key, shape):
    """Deterministic stand-in for torch.nn.init.xavier_uniform_."""
    if len(shape) > 2:
        rf = 1
        for s in shape[2:]:
            rf *= s
        fan_in, fan_out = shape[1] * rf, shape[0] * rf
    else:
        fan_in, fan_out = shape[1], shape[0]
    bound = (6.0 / (fan_in + fan_out)) ** 0.5
    return jax.random.uniform(key, shape, jnp.float32, -bound, bound)


def ref_forward(weight_matrix, weight_matrix_block, bias, e1_col, e2_col):
    """Pure-JAX f32 reference mirroring the PyTorch forward exactly."""
    D, _, T = weight_matrix.shape
    scoring = (e1_col.T @ weight_matrix.reshape(D, D * T)).reshape(D, T)
    scoring = scoring.T @ e2_col
    combined = jnp.concatenate([e1_col, e2_col], axis=0)
    block = weight_matrix_block @ combined
    return jnp.maximum(scoring + block + bias, 0.0)


if __name__ == "__main__":
    D = 32    # args.gcn_size[-1]
    T = 16    # args.tensor_neurons
    B = 64    # batch of graph pairs for the batched path

    key = jax.random.PRNGKey(0)
    k1, k2, k3, k4, k5 = jax.random.split(key, 5)
    weight_matrix = xavier_uniform(k1, (D, D, T))
    weight_matrix_block = xavier_uniform(k2, (T, 2 * D))
    bias = xavier_uniform(k3, (T, 1))
    e1_batch = jax.random.normal(k4, (B, D), jnp.float32)
    e2_batch = jax.random.normal(k5, (B, D), jnp.float32)

    forward, forward_batched = make_tensor_network(weight_matrix, weight_matrix_block, bias)

    def ref_row(a, b):
        return ref_forward(weight_matrix, weight_matrix_block, bias,
                           a[:, None], b[:, None])[:, 0]

    # Single-pair path (matches the PyTorch module signature: (D,1),(D,1) -> (T,1)).
    out_single = jax.block_until_ready(
        forward(e1_batch[0][:, None], e2_batch[0][:, None]))
    ref_single = ref_forward(weight_matrix, weight_matrix_block, bias,
                             e1_batch[0][:, None], e2_batch[0][:, None])
    assert out_single.shape == (T, 1), out_single.shape
    # bf16 MXU operands (f32 accumulation): tolerance loosened vs pure f32.
    assert jnp.allclose(out_single, ref_single, rtol=2e-2, atol=3e-2), (out_single, ref_single)

    # Batched path (grid over batch tiles, weights stationary in VMEM).
    out_batch = jax.block_until_ready(forward_batched(e1_batch, e2_batch))
    ref_batch = jax.vmap(ref_row)(e1_batch, e2_batch)
    assert out_batch.shape == (B, T), out_batch.shape
    assert jnp.allclose(out_batch, ref_batch, rtol=2e-2, atol=3e-2)

    # Uneven larger batch: exercises balanced tiling, batch padding, and a 2-step parallel grid.
    B2 = 300
    k6, k7 = jax.random.split(jax.random.PRNGKey(1))
    e1_big = jax.random.normal(k6, (B2, D), jnp.float32)
    e2_big = jax.random.normal(k7, (B2, D), jnp.float32)
    out_big = jax.block_until_ready(forward_batched(e1_big, e2_big))
    ref_big = jax.vmap(ref_row)(e1_big, e2_big)
    assert out_big.shape == (B2, T), out_big.shape
    assert jnp.allclose(out_big, ref_big, rtol=2e-2, atol=3e-2)

    print("KERNEL_OK")
</pallas_src>

<mosaic_0001>
module attributes {stable_mosaic.version = 11 : i64} {
  func.func @ntn_kernel(%arg0: i32, %arg1: memref<8x64xbf16, #tpu.memory_space<vmem>>, %arg2: memref<64x2048xbf16, #tpu.memory_space<vmem>>, %arg3: memref<1088x128xbf16, #tpu.memory_space<vmem>>, %arg4: memref<1x128xf32, #tpu.memory_space<vmem>>, %arg5: memref<8x128xf32, #tpu.memory_space<vmem>>) attributes {dimension_semantics = [#tpu.dimension_semantics<parallel>], iteration_bounds = array<i64: 1>, scalar_prefetch = 0 : i64, scratch_operands = 0 : i64, tpu.core_type = #tpu.core_type<tc>, window_params = [{transform_indices = @transform_0, window_bounds = array<i64: 8, 64>}, {pipeline_mode = #tpu.pipeline_mode<synchronous>, transform_indices = @transform_1, window_bounds = array<i64: 64, 2048>}, {pipeline_mode = #tpu.pipeline_mode<synchronous>, transform_indices = @transform_2, window_bounds = array<i64: 1088, 128>}, {pipeline_mode = #tpu.pipeline_mode<synchronous>, transform_indices = @transform_3, window_bounds = array<i64: 1, 128>}, {transform_indices = @transform_4, window_bounds = array<i64: 8, 128>}]} {
    %c0 = arith.constant 0 : index
    %c0_0 = arith.constant 0 : index
    %0 = vector.load %arg1[%c0, %c0_0] : memref<8x64xbf16, #tpu.memory_space<vmem>>, vector<8x64xbf16>
    %c0_1 = arith.constant 0 : index
    %c0_2 = arith.constant 0 : index
    %1 = vector.load %arg2[%c0_1, %c0_2] : memref<64x2048xbf16, #tpu.memory_space<vmem>>, vector<64x2048xbf16>
    %cst = arith.constant dense<0.000000e+00> : vector<8x2048xf32>
    %2 = tpu.matmul %0, %1, %cst {dimension_numbers = #tpu.dot_dimension_numbers<[1], [0], [0], [1], [0, 0, 1, 1], [], []>} : vector<8x64xbf16>, vector<64x2048xbf16>, vector<8x2048xf32> -> vector<8x2048xf32>
    %3 = vector.extract_strided_slice %2 {offsets = [0, 0], sizes = [8, 1024], strides = [1, 1]} : vector<8x2048xf32> to vector<8x1024xf32>
    %4 = vector.extract_strided_slice %2 {offsets = [0, 1024], sizes = [8, 1024], strides = [1, 1]} : vector<8x2048xf32> to vector<8x1024xf32>
    %5 = arith.mulf %3, %4 : vector<8x1024xf32>
    %6 = arith.truncf %5 : vector<8x1024xf32> to vector<8x1024xbf16>
    %7 = tpu.concatenate %6, %0 in 1 : vector<8x1024xbf16>, vector<8x64xbf16> -> vector<8x1088xbf16>
    %c0_3 = arith.constant 0 : index
    %c0_4 = arith.constant 0 : index
    %8 = vector.load %arg3[%c0_3, %c0_4] : memref<1088x128xbf16, #tpu.memory_space<vmem>>, vector<1088x128xbf16>
    %cst_5 = arith.constant dense<0.000000e+00> : vector<8x128xf32>
    %9 = tpu.matmul %7, %8, %cst_5 {dimension_numbers = #tpu.dot_dimension_numbers<[1], [0], [0], [1], [0, 0, 1, 1], [], []>} : vector<8x1088xbf16>, vector<1088x128xbf16>, vector<8x128xf32> -> vector<8x128xf32>
    %c0_6 = arith.constant 0 : index
    %c0_7 = arith.constant 0 : index
    %10 = vector.load %arg4[%c0_6, %c0_7] : memref<1x128xf32, #tpu.memory_space<vmem>>, vector<1x128xf32>
    %11 = vector.broadcast %10 : vector<1x128xf32> to vector<8x128xf32>
    %12 = arith.addf %9, %11 : vector<8x128xf32>
    %cst_8 = arith.constant 0.000000e+00 : f32
    %13 = vector.broadcast %cst_8 : f32 to vector<8x128xf32>
    %14 = arith.maximumf %12, %13 : vector<8x128xf32>
    %c0_9 = arith.constant 0 : index
    %c0_10 = arith.constant 0 : index
    %15 = vector.load %arg5[%c0_9, %c0_10] : memref<8x128xf32, #tpu.memory_space<vmem>>, vector<8x128xf32>
    tpu.vector_store %arg5[%c0_9, %c0_10], %14 {strides = array<i32>} : memref<8x128xf32, #tpu.memory_space<vmem>>, vector<8x128xf32>,
    return
  }
  func.func @transform_0(%arg0: i32) -> (i32, i32) {
    %c0_i32 = arith.constant 0 : i32
    %c0_i32_0 = arith.constant 0 : i32
    return %arg0, %c0_i32 : i32, i32
  }
  func.func @transform_1(%arg0: i32) -> (i32, i32) {
    %c0_i32 = arith.constant 0 : i32
    %c0_i32_0 = arith.constant 0 : i32
    %c0_i32_1 = arith.constant 0 : i32
    return %c0_i32, %c0_i32_0 : i32, i32
  }
  func.func @transform_2(%arg0: i32) -> (i32, i32) {
    %c0_i32 = arith.constant 0 : i32
    %c0_i32_0 = arith.constant 0 : i32
    %c0_i32_1 = arith.constant 0 : i32
    return %c0_i32, %c0_i32_0 : i32, i32
  }
  func.func @transform_3(%arg0: i32) -> (i32, i32) {
    %c0_i32 = arith.constant 0 : i32
    %c0_i32_0 = arith.constant 0 : i32
    %c0_i32_1 = arith.constant 0 : i32
    return %c0_i32, %c0_i32_0 : i32, i32
  }
  func.func @transform_4(%arg0: i32) -> (i32, i32) {
    %c0_i32 = arith.constant 0 : i32
    %c0_i32_0 = arith.constant 0 : i32
    return %arg0, %c0_i32 : i32, i32
  }
}

</mosaic_0001>

<llo_original>
// kernel: forward_batched.1
$region0: #{forward_batched.1}
  #allocation0 [shape = 'u32[]', space=smem, size = 0x4, offset = 0x4, fixed_abs, tag = 'smem constant byte address 0x4 - core index']
  #allocation1 [shape = 'u32[144,128]{1,0:T(1,128)}', space=vmem, size = 0x12000, scoped, tag = 'internal scratch']
  %s0 = inlined_call_operand.vmem [shape: bf16[8,64], index: 0, kind: input, shape index: {}]
  %s1 = inlined_call_operand.vmem [shape: bf16[64,2048], index: 1, kind: input, shape index: {}]
  %s2 = inlined_call_operand.vmem [shape: bf16[1088,128], index: 2, kind: input, shape index: {}]
  %s3 = inlined_call_operand.vmem [shape: f32[1,128], index: 3, kind: input, shape index: {}]
  %s4 = inlined_call_operand.vmem [shape: f32[8,128], index: 4, kind: output, shape index: {}]
  %s5 = sld [smem:[#allocation0]]
  $region26: #{forward_batched.1} parent=0
    _
  %s7 = ssub.s32 1, %s5
  %s8 = scalar_select 0, %s7, %s5
  // Predicated region
  $region2: #{forward_batched.1} parent=0 // pred_check
    _
  $region3: #{forward_batched.1} parent=0 // pred_check_branch
    %10 = sbr.rel (0) target = $region5
  $region4: #{forward_batched.1} parent=0 // pred_region
    _
  $region5: #{forward_batched.1} parent=0 // pred_fallthru
    _
  // Predicated region
  $region6: #{forward_batched.1} parent=0 // pred_check
    _
  $region7: #{forward_batched.1} parent=0 // pred_check_branch
    %12 = sbr.rel (0) target = $region9
  $region8: #{forward_batched.1} parent=0 // pred_region
    _
  $region9: #{forward_batched.1} parent=0 // pred_fallthru
    _
  // Predicated region
  $region10: #{forward_batched.1} parent=0 // pred_check
    _
  $region11: #{forward_batched.1} parent=0 // pred_check_branch
    %14 = sbr.rel (0) target = $region13
  $region12: #{forward_batched.1} parent=0 // pred_region
    _
  $region13: #{forward_batched.1} parent=0 // pred_fallthru
    _
  // Predicated region
  $region14: #{forward_batched.1} parent=0 // pred_check
    _
  $region15: #{forward_batched.1} parent=0 // pred_check_branch
    %16 = sbr.rel (0) target = $region17
  $region16: #{forward_batched.1} parent=0 // pred_region
    _
  $region17: #{forward_batched.1} parent=0 // pred_fallthru
    _
  %v18 = vld [vmem:[%s0] sm:$0xf]
  %v19 = vld [vmem:[%s1] sm:$0xff]
  %v20 = vld [vmem:[%s1 + $0x8] sm:$0xff]
  %v21 = vld [vmem:[%s1 + $0x10] sm:$0xff]
  %v22 = vld [vmem:[%s1 + $0x18] sm:$0xff]
  %v23 = vld [vmem:[%s1 + $0x20] sm:$0xff]
  %v24 = vld [vmem:[%s1 + $0x28] sm:$0xff]
  %v25 = vld [vmem:[%s1 + $0x30] sm:$0xff]
  %v26 = vld [vmem:[%s1 + $0x38] sm:$0xff]
  %v27 = vld [vmem:[%s1 + $0x40] sm:$0xff]
  %v28 = vld [vmem:[%s1 + $0x48] sm:$0xff]
  %v29 = vld [vmem:[%s1 + $0x50] sm:$0xff]
  %v30 = vld [vmem:[%s1 + $0x58] sm:$0xff]
  %v31 = vld [vmem:[%s1 + $0x60] sm:$0xff]
  %v32 = vld [vmem:[%s1 + $0x68] sm:$0xff]
  %v33 = vld [vmem:[%s1 + $0x70] sm:$0xff]
  %v34 = vld [vmem:[%s1 + $0x78] sm:$0xff]
  %v35 = vld [vmem:[%s1 + $0x80] sm:$0xff]
  %v36 = vld [vmem:[%s1 + $0x88] sm:$0xff]
  %v37 = vld [vmem:[%s1 + $0x90] sm:$0xff]
  %v38 = vld [vmem:[%s1 + $0x98] sm:$0xff]
  %v39 = vld [vmem:[%s1 + $0xa0] sm:$0xff]
  %v40 = vld [vmem:[%s1 + $0xa8] sm:$0xff]
  %v41 = vld [vmem:[%s1 + $0xb0] sm:$0xff]
  %v42 = vld [vmem:[%s1 + $0xb8] sm:$0xff]
  %v43 = vld [vmem:[%s1 + $0xc0] sm:$0xff]
  %v44 = vld [vmem:[%s1 + $0xc8] sm:$0xff]
  %v45 = vld [vmem:[%s1 + $0xd0] sm:$0xff]
  %v46 = vld [vmem:[%s1 + $0xd8] sm:$0xff]
  %v47 = vld [vmem:[%s1 + $0xe0] sm:$0xff]
  %v48 = vld [vmem:[%s1 + $0xe8] sm:$0xff]
  %v49 = vld [vmem:[%s1 + $0xf0] sm:$0xff]
  %v50 = vld [vmem:[%s1 + $0xf8] sm:$0xff]
  %v51 = vld [vmem:[%s1 + $0x100] sm:$0xff]
  %v52 = vld [vmem:[%s1 + $0x108] sm:$0xff]
  %v53 = vld [vmem:[%s1 + $0x110] sm:$0xff]
  %v54 = vld [vmem:[%s1 + $0x118] sm:$0xff]
  %v55 = vld [vmem:[%s1 + $0x120] sm:$0xff]
  %v56 = vld [vmem:[%s1 + $0x128] sm:$0xff]
  %v57 = vld [vmem:[%s1 + $0x130] sm:$0xff]
  %v58 = vld [vmem:[%s1 + $0x138] sm:$0xff]
  %v59 = vld [vmem:[%s1 + $0x140] sm:$0xff]
  %v60 = vld [vmem:[%s1 + $0x148] sm:$0xff]
  %v61 = vld [vmem:[%s1 + $0x150] sm:$0xff]
  %v62 = vld [vmem:[%s1 + $0x158] sm:$0xff]
  %v63 = vld [vmem:[%s1 + $0x160] sm:$0xff]
  %v64 = vld [vmem:[%s1 + $0x168] sm:$0xff]
  %v65 = vld [vmem:[%s1 + $0x170] sm:$0xff]
  %v66 = vld [vmem:[%s1 + $0x178] sm:$0xff]
  %v67 = vld [vmem:[%s1 + $0x180] sm:$0xff]
  %v68 = vld [vmem:[%s1 + $0x188] sm:$0xff]
  %v69 = vld [vmem:[%s1 + $0x190] sm:$0xff]
  %v70 = vld [vmem:[%s1 + $0x198] sm:$0xff]
  %v71 = vld [vmem:[%s1 + $0x1a0] sm:$0xff]
  %v72 = vld [vmem:[%s1 + $0x1a8] sm:$0xff]
  %v73 = vld [vmem:[%s1 + $0x1b0] sm:$0xff]
  %v74 = vld [vmem:[%s1 + $0x1b8] sm:$0xff]
  %v75 = vld [vmem:[%s1 + $0x1c0] sm:$0xff]
  %v76 = vld [vmem:[%s1 + $0x1c8] sm:$0xff]
  %v77 = vld [vmem:[%s1 + $0x1d0] sm:$0xff]
  %v78 = vld [vmem:[%s1 + $0x1d8] sm:$0xff]
  %v79 = vld [vmem:[%s1 + $0x1e0] sm:$0xff]
  %v80 = vld [vmem:[%s1 + $0x1e8] sm:$0xff]
  %v81 = vld [vmem:[%s1 + $0x1f0] sm:$0xff]
  %v82 = vld [vmem:[%s1 + $0x1f8] sm:$0xff]
  %v147 = vunpack.c.l.b16 %v19
  %v148 = vunpack.c.h.b16 %v19
  %v149 = vunpack.c.l.b16 %v20
  %v150 = vunpack.c.h.b16 %v20
  %v151 = vunpack.c.l.b16 %v21
  %v152 = vunpack.c.h.b16 %v21
  %v153 = vunpack.c.l.b16 %v22
  %v154 = vunpack.c.h.b16 %v22
  %v155 = vunpack.c.l.b16 %v23
  %v156 = vunpack.c.h.b16 %v23
  %v157 = vunpack.c.l.b16 %v24
  %v158 = vunpack.c.h.b16 %v24
  %v159 = vunpack.c.l.b16 %v25
  %v160 = vunpack.c.h.b16 %v25
  %v161 = vunpack.c.l.b16 %v26
  %v162 = vunpack.c.h.b16 %v26
  %v163 = vunpack.c.l.b16 %v27
  %v164 = vunpack.c.h.b16 %v27
  %v165 = vunpack.c.l.b16 %v28
  %v166 = vunpack.c.h.b16 %v28
  %v167 = vunpack.c.l.b16 %v29
  %v168 = vunpack.c.h.b16 %v29
  %v169 = vunpack.c.l.b16 %v30
  %v170 = vunpack.c.h.b16 %v30
  %v171 = vunpack.c.l.b16 %v31
  %v172 = vunpack.c.h.b16 %v31
  %v173 = vunpack.c.l.b16 %v32
  %v174 = vunpack.c.h.b16 %v32
  %v175 = vunpack.c.l.b16 %v33
  %v176 = vunpack.c.h.b16 %v33
  %v177 = vunpack.c.l.b16 %v34
  %v178 = vunpack.c.h.b16 %v34
  %v179 = vunpack.c.l.b16 %v35
  %v180 = vunpack.c.h.b16 %v35
  %v181 = vunpack.c.l.b16 %v36
  %v182 = vunpack.c.h.b16 %v36
  %v183 = vunpack.c.l.b16 %v37
  %v184 = vunpack.c.h.b16 %v37
  %v185 = vunpack.c.l.b16 %v38
  %v186 = vunpack.c.h.b16 %v38
  %v187 = vunpack.c.l.b16 %v39
  %v188 = vunpack.c.h.b16 %v39
  %v189 = vunpack.c.l.b16 %v40
  %v190 = vunpack.c.h.b16 %v40
  %v191 = vunpack.c.l.b16 %v41
  %v192 = vunpack.c.h.b16 %v41
  %v193 = vunpack.c.l.b16 %v42
  %v194 = vunpack.c.h.b16 %v42
  %v195 = vunpack.c.l.b16 %v43
  %v196 = vunpack.c.h.b16 %v43
  %v197 = vunpack.c.l.b16 %v44
  %v198 = vunpack.c.h.b16 %v44
  %v199 = vunpack.c.l.b16 %v45
  %v200 = vunpack.c.h.b16 %v45
  %v201 = vunpack.c.l.b16 %v46
  %v202 = vunpack.c.h.b16 %v46
  %v203 = vunpack.c.l.b16 %v47
  %v204 = vunpack.c.h.b16 %v47
  %v205 = vunpack.c.l.b16 %v48
  %v206 = vunpack.c.h.b16 %v48
  %v207 = vunpack.c.l.b16 %v49
  %v208 = vunpack.c.h.b16 %v49
  %v209 = vunpack.c.l.b16 %v50
  %v210 = vunpack.c.h.b16 %v50
  %v211 = vunpack.c.l.b16 %v51
  %v212 = vunpack.c.h.b16 %v51
  %v213 = vunpack.c.l.b16 %v52
  %v214 = vunpack.c.h.b16 %v52
  %v215 = vunpack.c.l.b16 %v53
  %v216 = vunpack.c.h.b16 %v53
  %v217 = vunpack.c.l.b16 %v54
  %v218 = vunpack.c.h.b16 %v54
  %v219 = vunpack.c.l.b16 %v55
  %v220 = vunpack.c.h.b16 %v55
  %v221 = vunpack.c.l.b16 %v56
  %v222 = vunpack.c.h.b16 %v56
  %v223 = vunpack.c.l.b16 %v57
  %v224 = vunpack.c.h.b16 %v57
  %v225 = vunpack.c.l.b16 %v58
  %v226 = vunpack.c.h.b16 %v58
  %v227 = vunpack.c.l.b16 %v59
  %v228 = vunpack.c.h.b16 %v59
  %v229 = vunpack.c.l.b16 %v60
  %v230 = vunpack.c.h.b16 %v60
  %v231 = vunpack.c.l.b16 %v61
  %v232 = vunpack.c.h.b16 %v61
  %v233 = vunpack.c.l.b16 %v62
  %v234 = vunpack.c.h.b16 %v62
  %v235 = vunpack.c.l.b16 %v63
  %v236 = vunpack.c.h.b16 %v63
  %v237 = vunpack.c.l.b16 %v64
  %v238 = vunpack.c.h.b16 %v64
  %v239 = vunpack.c.l.b16 %v65
  %v240 = vunpack.c.h.b16 %v65
  %v241 = vunpack.c.l.b16 %v66
  %v242 = vunpack.c.h.b16 %v66
  %v243 = vunpack.c.l.b16 %v67
  %v244 = vunpack.c.h.b16 %v67
  %v245 = vunpack.c.l.b16 %v68
  %v246 = vunpack.c.h.b16 %v68
  %v247 = vunpack.c.l.b16 %v69
  %v248 = vunpack.c.h.b16 %v69
  %v249 = vunpack.c.l.b16 %v70
  %v250 = vunpack.c.h.b16 %v70
  %v251 = vunpack.c.l.b16 %v71
  %v252 = vunpack.c.h.b16 %v71
  %v253 = vunpack.c.l.b16 %v72
  %v254 = vunpack.c.h.b16 %v72
  %v255 = vunpack.c.l.b16 %v73
  %v256 = vunpack.c.h.b16 %v73
  %v257 = vunpack.c.l.b16 %v74
  %v258 = vunpack.c.h.b16 %v74
  %v259 = vunpack.c.l.b16 %v75
  %v260 = vunpack.c.h.b16 %v75
  %v261 = vunpack.c.l.b16 %v76
  %v262 = vunpack.c.h.b16 %v76
  %v263 = vunpack.c.l.b16 %v77
  %v264 = vunpack.c.h.b16 %v77
  %v265 = vunpack.c.l.b16 %v78
  %v266 = vunpack.c.h.b16 %v78
  %v267 = vunpack.c.l.b16 %v79
  %v268 = vunpack.c.h.b16 %v79
  %v269 = vunpack.c.l.b16 %v80
  %v270 = vunpack.c.h.b16 %v80
  %v271 = vunpack.c.l.b16 %v81
  %v272 = vunpack.c.h.b16 %v81
  %v273 = vunpack.c.l.b16 %v82
  %v274 = vunpack.c.h.b16 %v82
  %v275 = vpack.c.b16 %v163, %v147
  %v276 = vpack.c.b16 %v164, %v148
  %v277 = vpack.c.b16 %v165, %v149
  %v278 = vpack.c.b16 %v166, %v150
  %v279 = vpack.c.b16 %v167, %v151
  %v280 = vpack.c.b16 %v168, %v152
  %v281 = vpack.c.b16 %v169, %v153
  %v282 = vpack.c.b16 %v170, %v154
  %v283 = vpack.c.b16 %v171, %v155
  %v284 = vpack.c.b16 %v172, %v156
  %v285 = vpack.c.b16 %v173, %v157
  %v286 = vpack.c.b16 %v174, %v158
  %v287 = vpack.c.b16 %v175, %v159
  %v288 = vpack.c.b16 %v176, %v160
  %v289 = vpack.c.b16 %v177, %v161
  %v290 = vpack.c.b16 %v178, %v162
  %v291 = vpack.c.b16 %v195, %v179
  %v292 = vpack.c.b16 %v196, %v180
  %v293 = vpack.c.b16 %v197, %v181
  %v294 = vpack.c.b16 %v198, %v182
  %v295 = vpack.c.b16 %v199, %v183
  %v296 = vpack.c.b16 %v200, %v184
  %v297 = vpack.c.b16 %v201, %v185
  %v298 = vpack.c.b16 %v202, %v186
  %v299 = vpack.c.b16 %v203, %v187
  %v300 = vpack.c.b16 %v204, %v188
  %v301 = vpack.c.b16 %v205, %v189
  %v302 = vpack.c.b16 %v206, %v190
  %v303 = vpack.c.b16 %v207, %v191
  %v304 = vpack.c.b16 %v208, %v192
  %v305 = vpack.c.b16 %v209, %v193
  %v306 = vpack.c.b16 %v210, %v194
  %v307 = vpack.c.b16 %v227, %v211
  %v308 = vpack.c.b16 %v228, %v212
  %v309 = vpack.c.b16 %v229, %v213
  %v310 = vpack.c.b16 %v230, %v214
  %v311 = vpack.c.b16 %v231, %v215
  %v312 = vpack.c.b16 %v232, %v216
  %v313 = vpack.c.b16 %v233, %v217
  %v314 = vpack.c.b16 %v234, %v218
  %v315 = vpack.c.b16 %v235, %v219
  %v316 = vpack.c.b16 %v236, %v220
  %v317 = vpack.c.b16 %v237, %v221
  %v318 = vpack.c.b16 %v238, %v222
  %v319 = vpack.c.b16 %v239, %v223
  %v320 = vpack.c.b16 %v240, %v224
  %v321 = vpack.c.b16 %v241, %v225
  %v322 = vpack.c.b16 %v242, %v226
  %v323 = vpack.c.b16 %v259, %v243
  %v324 = vpack.c.b16 %v260, %v244
  %v325 = vpack.c.b16 %v261, %v245
  %v326 = vpack.c.b16 %v262, %v246
  %v327 = vpack.c.b16 %v263, %v247
  %v328 = vpack.c.b16 %v264, %v248
  %v329 = vpack.c.b16 %v265, %v249
  %v330 = vpack.c.b16 %v266, %v250
  %v331 = vpack.c.b16 %v267, %v251
  %v332 = vpack.c.b16 %v268, %v252
  %v333 = vpack.c.b16 %v269, %v253
  %v334 = vpack.c.b16 %v270, %v254
  %v335 = vpack.c.b16 %v271, %v255
  %v336 = vpack.c.b16 %v272, %v256
  %v337 = vpack.c.b16 %v273, %v257
  %v338 = vpack.c.b16 %v274, %v258
  %vm403 = vcmask 523264
  %v405 = vsel %vm403, %v18, 0
  %407 = vmatprep.subr.bf16.mxu0 %v276
  %408 = vmatpush1.bf16.msra.mxu0 %v275
  %409 = vmatprep.subr.bf16.mxu0 %v292
  %410 = vmatpush1.bf16.msra.mxu0 %v291
  %411 = vmatprep.subr.bf16.mxu0 %v308
  %412 = vmatpush1.bf16.msra.mxu0 %v307
  %413 = vmatprep.subr.bf16.mxu0 %v324
  %414 = vmatpush1.bf16.msra.mxu0 %v323
  %415 = vmatprep.subr.bf16.mxu0 0
  %416 = vmatpush1.bf16.msra.mxu0 0
  %417 = vmatprep.subr.bf16.mxu0 0
  %418 = vmatpush1.bf16.msra.mxu0 0
  %419 = vmatprep.subr.bf16.mxu0 0
  %420 = vmatpush1.bf16.msra.mxu0 0
  %421 = vmatprep.subr.bf16.mxu0 0
  %422 = vmatpush1.bf16.msra.mxu0 0
  %423 = vmatprep.subr.bf16.mxu0 0
  %424 = vmatpush1.bf16.msra.mxu0 0
  %425 = vmatprep.subr.bf16.mxu0 0
  %426 = vmatpush1.bf16.msra.mxu0 0
  %427 = vmatprep.subr.bf16.mxu0 0
  %428 = vmatpush1.bf16.msra.mxu0 0
  %429 = vmatprep.subr.bf16.mxu0 0
  %430 = vmatpush1.bf16.msra.mxu0 0
  %431 = vmatprep.subr.bf16.mxu0 0
  %432 = vmatpush1.bf16.msra.mxu0 0
  %433 = vmatprep.subr.bf16.mxu0 0
  %434 = vmatpush1.bf16.msra.mxu0 0
  %435 = vmatprep.subr.bf16.mxu0 0
  %436 = vmatpush1.bf16.msra.mxu0 0
  %437 = vmatprep.subr.bf16.mxu0 0
  %438 = vmatpush1.bf16.msra.mxu0 0
  %439 = vmatprep.mubr.bf16.mxu0 0
  %440 = vmatmul.mubr.bf16.gmra.mrb[0].mxu0 %v405
  %v441 = vpop.f32.mrb[0].mxu0
  %v442 = vadd.f32 0.0, %v441
  %v443 = vpop.f32.mrb[0].mxu0
  %v444 = vadd.f32 0.0, %v443
  %v445 = vpop.f32.mrb[0].mxu0
  %v446 = vpop.f32.mrb[0].mxu0
  %447 = vdwg.mxu0
  %448 = vmatprep.subr.bf16.mxu0 %v278
  %449 = vmatpush1.bf16.msra.mxu0 %v277
  %450 = vmatprep.subr.bf16.mxu0 %v294
  %451 = vmatpush1.bf16.msra.mxu0 %v293
  %452 = vmatprep.subr.bf16.mxu0 %v310
  %453 = vmatpush1.bf16.msra.mxu0 %v309
  %454 = vmatprep.subr.bf16.mxu0 %v326
  %455 = vmatpush1.bf16.msra.mxu0 %v325
  %456 = vmatprep.subr.bf16.mxu0 0
  %457 = vmatpush1.bf16.msra.mxu0 0
  %458 = vmatprep.subr.bf16.mxu0 0
  %459 = vmatpush1.bf16.msra.mxu0 0
  %460 = vmatprep.subr.bf16.mxu0 0
  %461 = vmatpush1.bf16.msra.mxu0 0
  %462 = vmatprep.subr.bf16.mxu0 0
  %463 = vmatpush1.bf16.msra.mxu0 0
  %464 = vmatprep.subr.bf16.mxu0 0
  %465 = vmatpush1.bf16.msra.mxu0 0
  %466 = vmatprep.subr.bf16.mxu0 0
  %467 = vmatpush1.bf16.msra.mxu0 0
  %468 = vmatprep.subr.bf16.mxu0 0
  %469 = vmatpush1.bf16.msra.mxu0 0
  %470 = vmatprep.subr.bf16.mxu0 0
  %471 = vmatpush1.bf16.msra.mxu0 0
  %472 = vmatprep.subr.bf16.mxu0 0
  %473 = vmatpush1.bf16.msra.mxu0 0
  %474 = vmatprep.subr.bf16.mxu0 0
  %475 = vmatpush1.bf16.msra.mxu0 0
  %476 = vmatprep.subr.bf16.mxu0 0
  %477 = vmatpush1.bf16.msra.mxu0 0
  %478 = vmatprep.subr.bf16.mxu0 0
  %479 = vmatpush1.bf16.msra.mxu0 0
  %480 = vmatprep.mubr.bf16.mxu0 0
  %481 = vmatmul.mubr.bf16.gmra.mrb[0].mxu0 %v405
  %v482 = vpop.f32.mrb[0].mxu0
  %v483 = vadd.f32 0.0, %v482
  %v484 = vpop.f32.mrb[0].mxu0
  %v485 = vadd.f32 0.0, %v484
  %v486 = vpop.f32.mrb[0].mxu0
  %v487 = vpop.f32.mrb[0].mxu0
  %488 = vdwg.mxu0
  %489 = vmatprep.subr.bf16.mxu0 %v280
  %490 = vmatpush1.bf16.msra.mxu0 %v279
  %491 = vmatprep.subr.bf16.mxu0 %v296
  %492 = vmatpush1.bf16.msra.mxu0 %v295
  %493 = vmatprep.subr.bf16.mxu0 %v312
  %494 = vmatpush1.bf16.msra.mxu0 %v311
  %495 = vmatprep.subr.bf16.mxu0 %v328
  %496 = vmatpush1.bf16.msra.mxu0 %v327
  %497 = vmatprep.subr.bf16.mxu0 0
  %498 = vmatpush1.bf16.msra.mxu0 0
  %499 = vmatprep.subr.bf16.mxu0 0
  %500 = vmatpush1.bf16.msra.mxu0 0
  %501 = vmatprep.subr.bf16.mxu0 0
  %502 = vmatpush1.bf16.msra.mxu0 0
  %503 = vmatprep.subr.bf16.mxu0 0
  %504 = vmatpush1.bf16.msra.mxu0 0
  %505 = vmatprep.subr.bf16.mxu0 0
  %506 = vmatpush1.bf16.msra.mxu0 0
  %507 = vmatprep.subr.bf16.mxu0 0
  %508 = vmatpush1.bf16.msra.mxu0 0
  %509 = vmatprep.subr.bf16.mxu0 0
  %510 = vmatpush1.bf16.msra.mxu0 0
  %511 = vmatprep.subr.bf16.mxu0 0
  %512 = vmatpush1.bf16.msra.mxu0 0
  %513 = vmatprep.subr.bf16.mxu0 0
  %514 = vmatpush1.bf16.msra.mxu0 0
  %515 = vmatprep.subr.bf16.mxu0 0
  %516 = vmatpush1.bf16.msra.mxu0 0
  %517 = vmatprep.subr.bf16.mxu0 0
  %518 = vmatpush1.bf16.msra.mxu0 0
  %519 = vmatprep.subr.bf16.mxu0 0
  %520 = vmatpush1.bf16.msra.mxu0 0
  %521 = vmatprep.mubr.bf16.mxu0 0
  %522 = vmatmul.mubr.bf16.gmra.mrb[0].mxu0 %v405
  %v523 = vpop.f32.mrb[0].mxu0
  %v524 = vadd.f32 0.0, %v523
  %v525 = vpop.f32.mrb[0].mxu0
  %v526 = vadd.f32 0.0, %v525
  %v527 = vpop.f32.mrb[0].mxu0
  %v528 = vpop.f32.mrb[0].mxu0
  %529 = vdwg.mxu0
  %530 = vmatprep.subr.bf16.mxu0 %v282
  %531 = vmatpush1.bf16.msra.mxu0 %v281
  %532 = vmatprep.subr.bf16.mxu0 %v298
  %533 = vmatpush1.bf16.msra.mxu0 %v297
  %534 = vmatprep.subr.bf16.mxu0 %v314
  %535 = vmatpush1.bf16.msra.mxu0 %v313
  %536 = vmatprep.subr.bf16.mxu0 %v330
  %537 = vmatpush1.bf16.msra.mxu0 %v329
  %538 = vmatprep.subr.bf16.mxu0 0
  %539 = vmatpush1.bf16.msra.mxu0 0
  %540 = vmatprep.subr.bf16.mxu0 0
  %541 = vmatpush1.bf16.msra.mxu0 0
  %542 = vmatprep.subr.bf16.mxu0 0
  %543 = vmatpush1.bf16.msra.mxu0 0
  %544 = vmatprep.subr.bf16.mxu0 0
  %545 = vmatpush1.bf16.msra.mxu0 0
  %546 = vmatprep.subr.bf16.mxu0 0
  %547 = vmatpush1.bf16.msra.mxu0 0
  %548 = vmatprep.subr.bf16.mxu0 0
  %549 = vmatpush1.bf16.msra.mxu0 0
  %550 = vmatprep.subr.bf16.mxu0 0
  %551 = vmatpush1.bf16.msra.mxu0 0
  %552 = vmatprep.subr.bf16.mxu0 0
  %553 = vmatpush1.bf16.msra.mxu0 0
  %554 = vmatprep.subr.bf16.mxu0 0
  %555 = vmatpush1.bf16.msra.mxu0 0
  %556 = vmatprep.subr.bf16.mxu0 0
  %557 = vmatpush1.bf16.msra.mxu0 0
  %558 = vmatprep.subr.bf16.mxu0 0
  %559 = vmatpush1.bf16.msra.mxu0 0
  %560 = vmatprep.subr.bf16.mxu0 0
  %561 = vmatpush1.bf16.msra.mxu0 0
  %562 = vmatprep.mubr.bf16.mxu0 0
  %563 = vmatmul.mubr.bf16.gmra.mrb[0].mxu0 %v405
  %v564 = vpop.f32.mrb[0].mxu0
  %v565 = vadd.f32 0.0, %v564
  %v566 = vpop.f32.mrb[0].mxu0
  %v567 = vadd.f32 0.0, %v566
  %v568 = vpop.f32.mrb[0].mxu0
  %v569 = vpop.f32.mrb[0].mxu0
  %570 = vdwg.mxu0
  %571 = vmatprep.subr.bf16.mxu0 %v284
  %572 = vmatpush1.bf16.msra.mxu0 %v283
  %573 = vmatprep.subr.bf16.mxu0 %v300
  %574 = vmatpush1.bf16.msra.mxu0 %v299
  %575 = vmatprep.subr.bf16.mxu0 %v316
  %576 = vmatpush1.bf16.msra.mxu0 %v315
  %577 = vmatprep.subr.bf16.mxu0 %v332
  %578 = vmatpush1.bf16.msra.mxu0 %v331
  %579 = vmatprep.subr.bf16.mxu0 0
  %580 = vmatpush1.bf16.msra.mxu0 0
  %581 = vmatprep.subr.bf16.mxu0 0
  %582 = vmatpush1.bf16.msra.mxu0 0
  %583 = vmatprep.subr.bf16.mxu0 0
  %584 = vmatpush1.bf16.msra.mxu0 0
  %585 = vmatprep.subr.bf16.mxu0 0
  %586 = vmatpush1.bf16.msra.mxu0 0
  %587 = vmatprep.subr.bf16.mxu0 0
  %588 = vmatpush1.bf16.msra.mxu0 0
  %589 = vmatprep.subr.bf16.mxu0 0
  %590 = vmatpush1.bf16.msra.mxu0 0
  %591 = vmatprep.subr.bf16.mxu0 0
  %592 = vmatpush1.bf16.msra.mxu0 0
  %593 = vmatprep.subr.bf16.mxu0 0
  %594 = vmatpush1.bf16.msra.mxu0 0
  %595 = vmatprep.subr.bf16.mxu0 0
  %596 = vmatpush1.bf16.msra.mxu0 0
  %597 = vmatprep.subr.bf16.mxu0 0
  %598 = vmatpush1.bf16.msra.mxu0 0
  %599 = vmatprep.subr.bf16.mxu0 0
  %600 = vmatpush1.bf16.msra.mxu0 0
  %601 = vmatprep.subr.bf16.mxu0 0
  %602 = vmatpush1.bf16.msra.mxu0 0
  %603 = vmatprep.mubr.bf16.mxu0 0
  %604 = vmatmul.mubr.bf16.gmra.mrb[0].mxu0 %v405
  %v605 = vpop.f32.mrb[0].mxu0
  %v606 = vadd.f32 0.0, %v605
  %v607 = vpop.f32.mrb[0].mxu0
  %v608 = vadd.f32 0.0, %v607
  %v609 = vpop.f32.mrb[0].mxu0
  %v610 = vpop.f32.mrb[0].mxu0
  %611 = vdwg.mxu0
  %612 = vmatprep.subr.bf16.mxu0 %v286
  %613 = vmatpush1.bf16.msra.mxu0 %v285
  %614 = vmatprep.subr.bf16.mxu0 %v302
  %615 = vmatpush1.bf16.msra.mxu0 %v301
  %616 = vmatprep.subr.bf16.mxu0 %v318
  %617 = vmatpush1.bf16.msra.mxu0 %v317
  %618 = vmatprep.subr.bf16.mxu0 %v334
  %619 = vmatpush1.bf16.msra.mxu0 %v333
  %620 = vmatprep.subr.bf16.mxu0 0
  %621 = vmatpush1.bf16.msra.mxu0 0
  %622 = vmatprep.subr.bf16.mxu0 0
  %623 = vmatpush1.bf16.msra.mxu0 0
  %624 = vmatprep.subr.bf16.mxu0 0
  %625 = vmatpush1.bf16.msra.mxu0 0
  %626 = vmatprep.subr.bf16.mxu0 0
  %627 = vmatpush1.bf16.msra.mxu0 0
  %628 = vmatprep.subr.bf16.mxu0 0
  %629 = vmatpush1.bf16.msra.mxu0 0
  %630 = vmatprep.subr.bf16.mxu0 0
  %631 = vmatpush1.bf16.msra.mxu0 0
  %632 = vmatprep.subr.bf16.mxu0 0
  %633 = vmatpush1.bf16.msra.mxu0 0
  %634 = vmatprep.subr.bf16.mxu0 0
  %635 = vmatpush1.bf16.msra.mxu0 0
  %636 = vmatprep.subr.bf16.mxu0 0
  %637 = vmatpush1.bf16.msra.mxu0 0
  %638 = vmatprep.subr.bf16.mxu0 0
  %639 = vmatpush1.bf16.msra.mxu0 0
  %640 = vmatprep.subr.bf16.mxu0 0
  %641 = vmatpush1.bf16.msra.mxu0 0
  %642 = vmatprep.subr.bf16.mxu0 0
  %643 = vmatpush1.bf16.msra.mxu0 0
  %644 = vmatprep.mubr.bf16.mxu0 0
  %645 = vmatmul.mubr.bf16.gmra.mrb[0].mxu0 %v405
  %v646 = vpop.f32.mrb[0].mxu0
  %v647 = vadd.f32 0.0, %v646
  %v648 = vpop.f32.mrb[0].mxu0
  %v649 = vadd.f32 0.0, %v648
  %v650 = vpop.f32.mrb[0].mxu0
  %v651 = vpop.f32.mrb[0].mxu0
  %652 = vdwg.mxu0
  %653 = vmatprep.subr.bf16.mxu0 %v288
  %654 = vmatpush1.bf16.msra.mxu0 %v287
  %655 = vmatprep.subr.bf16.mxu0 %v304
  %656 = vmatpush1.bf16.msra.mxu0 %v303
  %657 = vmatprep.subr.bf16.mxu0 %v320
  %658 = vmatpush1.bf16.msra.mxu0 %v319
  %659 = vmatprep.subr.bf16.mxu0 %v336
  %660 = vmatpush1.bf16.msra.mxu0 %v335
  %661 = vmatprep.subr.bf16.mxu0 0
  %662 = vmatpush1.bf16.msra.mxu0 0
  %663 = vmatprep.subr.bf16.mxu0 0
  %664 = vmatpush1.bf16.msra.mxu0 0
  %665 = vmatprep.subr.bf16.mxu0 0
  %666 = vmatpush1.bf16.msra.mxu0 0
  %667 = vmatprep.subr.bf16.mxu0 0
  %668 = vmatpush1.bf16.msra.mxu0 0
  %669 = vmatprep.subr.bf16.mxu0 0
  %670 = vmatpush1.bf16.msra.mxu0 0
  %671 = vmatprep.subr.bf16.mxu0 0
  %672 = vmatpush1.bf16.msra.mxu0 0
  %673 = vmatprep.subr.bf16.mxu0 0
  %674 = vmatpush1.bf16.msra.mxu0 0
  %675 = vmatprep.subr.bf16.mxu0 0
  %676 = vmatpush1.bf16.msra.mxu0 0
  %677 = vmatprep.subr.bf16.mxu0 0
  %678 = vmatpush1.bf16.msra.mxu0 0
  %679 = vmatprep.subr.bf16.mxu0 0
  %680 = vmatpush1.bf16.msra.mxu0 0
  %681 = vmatprep.subr.bf16.mxu0 0
  %682 = vmatpush1.bf16.msra.mxu0 0
  %683 = vmatprep.subr.bf16.mxu0 0
  %684 = vmatpush1.bf16.msra.mxu0 0
  %685 = vmatprep.mubr.bf16.mxu0 0
  %686 = vmatmul.mubr.bf16.gmra.mrb[0].mxu0 %v405
  %v687 = vpop.f32.mrb[0].mxu0
  %v688 = vadd.f32 0.0, %v687
  %v689 = vpop.f32.mrb[0].mxu0
  %v690 = vadd.f32 0.0, %v689
  %v691 = vpop.f32.mrb[0].mxu0
  %v692 = vpop.f32.mrb[0].mxu0
  %693 = vdwg.mxu0
  %694 = vmatprep.subr.bf16.mxu0 %v290
  %695 = vmatpush1.bf16.msra.mxu0 %v289
  %696 = vmatprep.subr.bf16.mxu0 %v306
  %697 = vmatpush1.bf16.msra.mxu0 %v305
  %698 = vmatprep.subr.bf16.mxu0 %v322
  %699 = vmatpush1.bf16.msra.mxu0 %v321
  %700 = vmatprep.subr.bf16.mxu0 %v338
  %701 = vmatpush1.bf16.msra.mxu0 %v337
  %702 = vmatprep.subr.bf16.mxu0 0
  %703 = vmatpush1.bf16.msra.mxu0 0
  %704 = vmatprep.subr.bf16.mxu0 0
  %705 = vmatpush1.bf16.msra.mxu0 0
  %706 = vmatprep.subr.bf16.mxu0 0
  %707 = vmatpush1.bf16.msra.mxu0 0
  %708 = vmatprep.subr.bf16.mxu0 0
  %709 = vmatpush1.bf16.msra.mxu0 0
  %710 = vmatprep.subr.bf16.mxu0 0
  %711 = vmatpush1.bf16.msra.mxu0 0
  %712 = vmatprep.subr.bf16.mxu0 0
  %713 = vmatpush1.bf16.msra.mxu0 0
  %714 = vmatprep.subr.bf16.mxu0 0
  %715 = vmatpush1.bf16.msra.mxu0 0
  %716 = vmatprep.subr.bf16.mxu0 0
  %717 = vmatpush1.bf16.msra.mxu0 0
  %718 = vmatprep.subr.bf16.mxu0 0
  %719 = vmatpush1.bf16.msra.mxu0 0
  %720 = vmatprep.subr.bf16.mxu0 0
  %721 = vmatpush1.bf16.msra.mxu0 0
  %722 = vmatprep.subr.bf16.mxu0 0
  %723 = vmatpush1.bf16.msra.mxu0 0
  %724 = vmatprep.subr.bf16.mxu0 0
  %725 = vmatpush1.bf16.msra.mxu0 0
  %726 = vmatprep.mubr.bf16.mxu0 0
  %727 = vmatmul.mubr.bf16.gmra.mrb[0].mxu0 %v405
  %v728 = vpop.f32.mrb[0].mxu0
  %v729 = vadd.f32 0.0, %v728
  %v730 = vpop.f32.mrb[0].mxu0
  %v731 = vadd.f32 0.0, %v730
  %v732 = vpop.f32.mrb[0].mxu0
  %v733 = vpop.f32.mrb[0].mxu0
  %734 = vdwg.mxu0
  %v735 = vmul.f32 %v442, %v606
  %v736 = vmul.f32 %v444, %v608
  %v737 = vmul.f32 %v483, %v647
  %v738 = vmul.f32 %v485, %v649
  %v739 = vmul.f32 %v524, %v688
  %v740 = vmul.f32 %v526, %v690
  %v741 = vmul.f32 %v565, %v729
  %v742 = vmul.f32 %v567, %v731
  %v743 = vpack.c.bf16 %v735, %v735
  %v744 = vpack.c.bf16 %v736, %v736
  %v745 = vpack.c.bf16 %v737, %v737
  %v746 = vpack.c.bf16 %v738, %v738
  %v747 = vpack.c.bf16 %v739, %v739
  %v748 = vpack.c.bf16 %v740, %v740
  %v749 = vpack.c.bf16 %v741, %v741
  %v750 = vpack.c.bf16 %v742, %v742
  %v751 = vld [vmem:[%s2] sm:$0xf]
  %v752 = vld [vmem:[%s2 + $0x4] sm:$0xf]
  %v753 = vld [vmem:[%s2 + $0x8] sm:$0xf]
  %v754 = vld [vmem:[%s2 + $0xc] sm:$0xf]
  %v755 = vld [vmem:[%s2 + $0x10] sm:$0xf]
  %v756 = vld [vmem:[%s2 + $0x14] sm:$0xf]
  %v757 = vld [vmem:[%s2 + $0x18] sm:$0xf]
  %v758 = vld [vmem:[%s2 + $0x1c] sm:$0xf]
  %v759 = vld [vmem:[%s2 + $0x20] sm:$0xf]
  %v760 = vld [vmem:[%s2 + $0x24] sm:$0xf]
  %v761 = vld [vmem:[%s2 + $0x28] sm:$0xf]
  %v762 = vld [vmem:[%s2 + $0x2c] sm:$0xf]
  %v763 = vld [vmem:[%s2 + $0x30] sm:$0xf]
  %v764 = vld [vmem:[%s2 + $0x34] sm:$0xf]
  %v765 = vld [vmem:[%s2 + $0x38] sm:$0xf]
  %v766 = vld [vmem:[%s2 + $0x3c] sm:$0xf]
  %v767 = vld [vmem:[%s2 + $0x40] sm:$0xf]
  %v768 = vld [vmem:[%s2 + $0x44] sm:$0xf]
  %v769 = vld [vmem:[%s2 + $0x48] sm:$0xf]
  %v770 = vld [vmem:[%s2 + $0x4c] sm:$0xf]
  %v771 = vld [vmem:[%s2 + $0x50] sm:$0xf]
  %v772 = vld [vmem:[%s2 + $0x54] sm:$0xf]
  %v773 = vld [vmem:[%s2 + $0x58] sm:$0xf]
  %v774 = vld [vmem:[%s2 + $0x5c] sm:$0xf]
  %v775 = vld [vmem:[%s2 + $0x60] sm:$0xf]
  %v776 = vld [vmem:[%s2 + $0x64] sm:$0xf]
  %v777 = vld [vmem:[%s2 + $0x68] sm:$0xf]
  %v778 = vld [vmem:[%s2 + $0x6c] sm:$0xf]
  %v779 = vld [vmem:[%s2 + $0x70] sm:$0xf]
  %v780 = vld [vmem:[%s2 + $0x74] sm:$0xf]
  %v781 = vld [vmem:[%s2 + $0x78] sm:$0xf]
  %v782 = vld [vmem:[%s2 + $0x7c] sm:$0xf]
  %v783 = vld [vmem:[%s2 + $0x80] sm:$0xf]
  %v784 = vld [vmem:[%s2 + $0x84] sm:$0xf]
  %v785 = vld [vmem:[%s2 + $0x88] sm:$0xf]
  %v786 = vld [vmem:[%s2 + $0x8c] sm:$0xf]
  %v787 = vld [vmem:[%s2 + $0x90] sm:$0xf]
  %v788 = vld [vmem:[%s2 + $0x94] sm:$0xf]
  %v789 = vld [vmem:[%s2 + $0x98] sm:$0xf]
  %v790 = vld [vmem:[%s2 + $0x9c] sm:$0xf]
  %v791 = vld [vmem:[%s2 + $0xa0] sm:$0xf]
  %v792 = vld [vmem:[%s2 + $0xa4] sm:$0xf]
  %v793 = vld [vmem:[%s2 + $0xa8] sm:$0xf]
  %v794 = vld [vmem:[%s2 + $0xac] sm:$0xf]
  %v795 = vld [vmem:[%s2 + $0xb0] sm:$0xf]
  %v796 = vld [vmem:[%s2 + $0xb4] sm:$0xf]
  %v797 = vld [vmem:[%s2 + $0xb8] sm:$0xf]
  %v798 = vld [vmem:[%s2 + $0xbc] sm:$0xf]
  %v799 = vld [vmem:[%s2 + $0xc0] sm:$0xf]
  %v800 = vld [vmem:[%s2 + $0xc4] sm:$0xf]
  %v801 = vld [vmem:[%s2 + $0xc8] sm:$0xf]
  %v802 = vld [vmem:[%s2 + $0xcc] sm:$0xf]
  %v803 = vld [vmem:[%s2 + $0xd0] sm:$0xf]
  %v804 = vld [vmem:[%s2 + $0xd4] sm:$0xf]
  %v805 = vld [vmem:[%s2 + $0xd8] sm:$0xf]
  %v806 = vld [vmem:[%s2 + $0xdc] sm:$0xf]
  %v807 = vld [vmem:[%s2 + $0xe0] sm:$0xf]
  %v808 = vld [vmem:[%s2 + $0xe4] sm:$0xf]
  %v809 = vld [vmem:[%s2 + $0xe8] sm:$0xf]
  %v810 = vld [vmem:[%s2 + $0xec] sm:$0xf]
  %v811 = vld [vmem:[%s2 + $0xf0] sm:$0xf]
  %v812 = vld [vmem:[%s2 + $0xf4] sm:$0xf]
  %v813 = vld [vmem:[%s2 + $0xf8] sm:$0xf]
  %v814 = vld [vmem:[%s2 + $0xfc] sm:$0xf]
  %v815 = vld [vmem:[%s2 + $0x100] sm:$0xf]
  %v816 = vld [vmem:[%s2 + $0x104] sm:$0xf]
  %v817 = vld [vmem:[%s2 + $0x108] sm:$0xf]
  %v818 = vld [vmem:[%s2 + $0x10c] sm:$0xf]
  %v819 = vld [vmem:[%s2 + $0x110] sm:$0xf]
  %v820 = vld [vmem:[%s2 + $0x114] sm:$0xf]
  %v821 = vld [vmem:[%s2 + $0x118] sm:$0xf]
  %v822 = vld [vmem:[%s2 + $0x11c] sm:$0xf]
  %v823 = vld [vmem:[%s2 + $0x120] sm:$0xf]
  %v824 = vld [vmem:[%s2 + $0x124] sm:$0xf]
  %v825 = vld [vmem:[%s2 + $0x128] sm:$0xf]
  %v826 = vld [vmem:[%s2 + $0x12c] sm:$0xf]
  %v827 = vld [vmem:[%s2 + $0x130] sm:$0xf]
  %v828 = vld [vmem:[%s2 + $0x134] sm:$0xf]
  %v829 = vld [vmem:[%s2 + $0x138] sm:$0xf]
  %v830 = vld [vmem:[%s2 + $0x13c] sm:$0xf]
  %v831 = vld [vmem:[%s2 + $0x140] sm:$0xf]
  %v832 = vld [vmem:[%s2 + $0x144] sm:$0xf]
  %v833 = vld [vmem:[%s2 + $0x148] sm:$0xf]
  %v834 = vld [vmem:[%s2 + $0x14c] sm:$0xf]
  %v835 = vld [vmem:[%s2 + $0x150] sm:$0xf]
  %v836 = vld [vmem:[%s2 + $0x154] sm:$0xf]
  %v837 = vld [vmem:[%s2 + $0x158] sm:$0xf]
  %v838 = vld [vmem:[%s2 + $0x15c] sm:$0xf]
  %v839 = vld [vmem:[%s2 + $0x160] sm:$0xf]
  %v840 = vld [vmem:[%s2 + $0x164] sm:$0xf]
  %v841 = vld [vmem:[%s2 + $0x168] sm:$0xf]
  %v842 = vld [vmem:[%s2 + $0x16c] sm:$0xf]
  %v843 = vld [vmem:[%s2 + $0x170] sm:$0xf]
  %v844 = vld [vmem:[%s2 + $0x174] sm:$0xf]
  %v845 = vld [vmem:[%s2 + $0x178] sm:$0xf]
  %v846 = vld [vmem:[%s2 + $0x17c] sm:$0xf]
  %v847 = vld [vmem:[%s2 + $0x180] sm:$0xf]
  %v848 = vld [vmem:[%s2 + $0x184] sm:$0xf]
  %v849 = vld [vmem:[%s2 + $0x188] sm:$0xf]
  %v850 = vld [vmem:[%s2 + $0x18c] sm:$0xf]
  %v851 = vld [vmem:[%s2 + $0x190] sm:$0xf]
  %v852 = vld [vmem:[%s2 + $0x194] sm:$0xf]
  %v853 = vld [vmem:[%s2 + $0x198] sm:$0xf]
  %v854 = vld [vmem:[%s2 + $0x19c] sm:$0xf]
  %v855 = vld [vmem:[%s2 + $0x1a0] sm:$0xf]
  %v856 = vld [vmem:[%s2 + $0x1a4] sm:$0xf]
  %v857 = vld [vmem:[%s2 + $0x1a8] sm:$0xf]
  %v858 = vld [vmem:[%s2 + $0x1ac] sm:$0xf]
  %v859 = vld [vmem:[%s2 + $0x1b0] sm:$0xf]
  %v860 = vld [vmem:[%s2 + $0x1b4] sm:$0xf]
  %v861 = vld [vmem:[%s2 + $0x1b8] sm:$0xf]
  %v862 = vld [vmem:[%s2 + $0x1bc] sm:$0xf]
  %v863 = vld [vmem:[%s2 + $0x1c0] sm:$0xf]
  %v864 = vld [vmem:[%s2 + $0x1c4] sm:$0xf]
  %v865 = vld [vmem:[%s2 + $0x1c8] sm:$0xf]
  %v866 = vld [vmem:[%s2 + $0x1cc] sm:$0xf]
  %v867 = vld [vmem:[%s2 + $0x1d0] sm:$0xf]
  %v868 = vld [vmem:[%s2 + $0x1d4] sm:$0xf]
  %v869 = vld [vmem:[%s2 + $0x1d8] sm:$0xf]
  %v870 = vld [vmem:[%s2 + $0x1dc] sm:$0xf]
  %v871 = vld [vmem:[%s2 + $0x1e0] sm:$0xf]
  %v872 = vld [vmem:[%s2 + $0x1e4] sm:$0xf]
  %v873 = vld [vmem:[%s2 + $0x1e8] sm:$0xf]
  %v874 = vld [vmem:[%s2 + $0x1ec] sm:$0xf]
  %v875 = vld [vmem:[%s2 + $0x1f0] sm:$0xf]
  %v876 = vld [vmem:[%s2 + $0x1f4] sm:$0xf]
  %v877 = vld [vmem:[%s2 + $0x1f8] sm:$0xf]
  %v878 = vld [vmem:[%s2 + $0x1fc] sm:$0xf]
  %v879 = vld [vmem:[%s2 + $0x200] sm:$0xf]
  %v880 = vld [vmem:[%s2 + $0x204] sm:$0xf]
  %v881 = vld [vmem:[%s2 + $0x208] sm:$0xf]
  %v882 = vld [vmem:[%s2 + $0x20c] sm:$0xf]
  %v883 = vld [vmem:[%s2 + $0x210] sm:$0xf]
  %v884 = vld [vmem:[%s2 + $0x214] sm:$0xf]
  %v885 = vld [vmem:[%s2 + $0x218] sm:$0xf]
  %v886 = vld [vmem:[%s2 + $0x21c] sm:$0xf]
  %v887 = vld [vmem:[%s3] sm:$0x1]
  %v889 = vlaneseq
  %v890 = vshrl.u32 %v889, 7
  %v891 = vsub.s32 0, %v890
  %v892 = vrot.slane %v887, %v891
  %v1030 = vunpack.c.l.b16 %v751
  %v1031 = vunpack.c.l.b16 %v752
  %v1032 = vunpack.c.l.b16 %v753
  %v1033 = vunpack.c.l.b16 %v754
  %v1034 = vunpack.c.l.b16 %v755
  %v1035 = vunpack.c.l.b16 %v756
  %v1036 = vunpack.c.l.b16 %v757
  %v1037 = vunpack.c.l.b16 %v758
  %v1038 = vunpack.c.l.b16 %v759
  %v1039 = vunpack.c.l.b16 %v760
  %v1040 = vunpack.c.l.b16 %v761
  %v1041 = vunpack.c.l.b16 %v762
  %v1042 = vunpack.c.l.b16 %v763
  %v1043 = vunpack.c.l.b16 %v764
  %v1044 = vunpack.c.l.b16 %v765
  %v1045 = vunpack.c.l.b16 %v766
  %v1046 = vunpack.c.l.b16 %v767
  %v1047 = vunpack.c.l.b16 %v768
  %v1048 = vunpack.c.l.b16 %v769
  %v1049 = vunpack.c.l.b16 %v770
  %v1050 = vunpack.c.l.b16 %v771
  %v1051 = vunpack.c.l.b16 %v772
  %v1052 = vunpack.c.l.b16 %v773
  %v1053 = vunpack.c.l.b16 %v774
  %v1054 = vunpack.c.l.b16 %v775
  %v1055 = vunpack.c.l.b16 %v776
  %v1056 = vunpack.c.l.b16 %v777
  %v1057 = vunpack.c.l.b16 %v778
  %v1058 = vunpack.c.l.b16 %v779
  %v1059 = vunpack.c.l.b16 %v780
  %v1060 = vunpack.c.l.b16 %v781
  %v1061 = vunpack.c.l.b16 %v782
  %v1062 = vunpack.c.l.b16 %v783
  %v1063 = vunpack.c.l.b16 %v784
  %v1064 = vunpack.c.l.b16 %v785
  %v1065 = vunpack.c.l.b16 %v786
  %v1066 = vunpack.c.l.b16 %v787
  %v1067 = vunpack.c.l.b16 %v788
  %v1068 = vunpack.c.l.b16 %v789
  %v1069 = vunpack.c.l.b16 %v790
  %v1070 = vunpack.c.l.b16 %v791
  %v1071 = vunpack.c.l.b16 %v792
  %v1072 = vunpack.c.l.b16 %v793
  %v1073 = vunpack.c.l.b16 %v794
  %v1074 = vunpack.c.l.b16 %v795
  %v1075 = vunpack.c.l.b16 %v796
  %v1076 = vunpack.c.l.b16 %v797
  %v1077 = vunpack.c.l.b16 %v798
  %v1078 = vunpack.c.l.b16 %v799
  %v1079 = vunpack.c.l.b16 %v800
  %v1080 = vunpack.c.l.b16 %v801
  %v1081 = vunpack.c.l.b16 %v802
  %v1082 = vunpack.c.l.b16 %v803
  %v1083 = vunpack.c.l.b16 %v804
  %v1084 = vunpack.c.l.b16 %v805
  %v1085 = vunpack.c.l.b16 %v806
  %v1086 = vunpack.c.l.b16 %v807
  %v1087 = vunpack.c.l.b16 %v808
  %v1088 = vunpack.c.l.b16 %v809
  %v1089 = vunpack.c.l.b16 %v810
  %v1090 = vunpack.c.l.b16 %v811
  %v1091 = vunpack.c.l.b16 %v812
  %v1092 = vunpack.c.l.b16 %v813
  %v1093 = vunpack.c.l.b16 %v814
  %v1094 = vunpack.c.l.b16 %v815
  %v1095 = vunpack.c.l.b16 %v816
  %v1096 = vunpack.c.l.b16 %v817
  %v1097 = vunpack.c.l.b16 %v818
  %v1098 = vunpack.c.l.b16 %v819
  %v1099 = vunpack.c.l.b16 %v820
  %v1100 = vunpack.c.l.b16 %v821
  %v1101 = vunpack.c.l.b16 %v822
  %v1102 = vunpack.c.l.b16 %v823
  %v1103 = vunpack.c.l.b16 %v824
  %v1104 = vunpack.c.l.b16 %v825
  %v1105 = vunpack.c.l.b16 %v826
  %v1106 = vunpack.c.l.b16 %v827
  %v1107 = vunpack.c.l.b16 %v828
  %v1108 = vunpack.c.l.b16 %v829
  %v1109 = vunpack.c.l.b16 %v830
  %v1110 = vunpack.c.l.b16 %v831
  %v1111 = vunpack.c.l.b16 %v832
  %v1112 = vunpack.c.l.b16 %v833
  %v1113 = vunpack.c.l.b16 %v834
  %v1114 = vunpack.c.l.b16 %v835
  %v1115 = vunpack.c.l.b16 %v836
  %v1116 = vunpack.c.l.b16 %v837
  %v1117 = vunpack.c.l.b16 %v838
  %v1118 = vunpack.c.l.b16 %v839
  %v1119 = vunpack.c.l.b16 %v840
  %v1120 = vunpack.c.l.b16 %v841
  %v1121 = vunpack.c.l.b16 %v842
  %v1122 = vunpack.c.l.b16 %v843
  %v1123 = vunpack.c.l.b16 %v844
  %v1124 = vunpack.c.l.b16 %v845
  %v1125 = vunpack.c.l.b16 %v846
  %v1126 = vunpack.c.l.b16 %v847
  %v1127 = vunpack.c.l.b16 %v848
  %v1128 = vunpack.c.l.b16 %v849
  %v1129 = vunpack.c.l.b16 %v850
  %v1130 = vunpack.c.l.b16 %v851
  %v1131 = vunpack.c.l.b16 %v852
  %v1132 = vunpack.c.l.b16 %v853
  %v1133 = vunpack.c.l.b16 %v854
  %v1134 = vunpack.c.l.b16 %v855
  %v1135 = vunpack.c.l.b16 %v856
  %v1136 = vunpack.c.l.b16 %v857
  %v1137 = vunpack.c.l.b16 %v858
  %v1138 = vunpack.c.l.b16 %v859
  %v1139 = vunpack.c.l.b16 %v860
  %v1140 = vunpack.c.l.b16 %v861
  %v1141 = vunpack.c.l.b16 %v862
  %v1142 = vunpack.c.l.b16 %v863
  %v1143 = vunpack.c.l.b16 %v864
  %v1144 = vunpack.c.l.b16 %v865
  %v1145 = vunpack.c.l.b16 %v866
  %v1146 = vunpack.c.l.b16 %v867
  %v1147 = vunpack.c.l.b16 %v868
  %v1148 = vunpack.c.l.b16 %v869
  %v1149 = vunpack.c.l.b16 %v870
  %v1150 = vunpack.c.l.b16 %v871
  %v1151 = vunpack.c.l.b16 %v872
  %v1152 = vunpack.c.l.b16 %v873
  %v1153 = vunpack.c.l.b16 %v874
  %v1154 = vunpack.c.l.b16 %v875
  %v1155 = vunpack.c.l.b16 %v876
  %v1156 = vunpack.c.l.b16 %v877
  %v1157 = vunpack.c.l.b16 %v878
  %v1158 = vunpack.c.l.b16 %v879
  %v1159 = vunpack.c.l.b16 %v880
  %v1160 = vunpack.c.l.b16 %v881
  %v1161 = vunpack.c.l.b16 %v882
  %v1162 = vunpack.c.l.b16 %v883
  %v1163 = vunpack.c.l.b16 %v884
  %v1164 = vunpack.c.l.b16 %v885
  %v1165 = vunpack.c.l.b16 %v886
  %v1166 = vpack.c.b16 %v1031, %v1030
  %v1167 = vpack.c.b16 %v1033, %v1032
  %v1168 = vpack.c.b16 %v1035, %v1034
  %v1169 = vpack.c.b16 %v1037, %v1036
  %v1170 = vpack.c.b16 %v1039, %v1038
  %v1171 = vpack.c.b16 %v1041, %v1040
  %v1172 = vpack.c.b16 %v1043, %v1042
  %v1173 = vpack.c.b16 %v1045, %v1044
  %v1174 = vpack.c.b16 %v1047, %v1046
  %v1175 = vpack.c.b16 %v1049, %v1048
  %v1176 = vpack.c.b16 %v1051, %v1050
  %v1177 = vpack.c.b16 %v1053, %v1052
  %v1178 = vpack.c.b16 %v1055, %v1054
  %v1179 = vpack.c.b16 %v1057, %v1056
  %v1180 = vpack.c.b16 %v1059, %v1058
  %v1181 = vpack.c.b16 %v1061, %v1060
  %v1182 = vpack.c.b16 %v1063, %v1062
  %v1183 = vpack.c.b16 %v1065, %v1064
  %v1184 = vpack.c.b16 %v1067, %v1066
  %v1185 = vpack.c.b16 %v1069, %v1068
  %v1186 = vpack.c.b16 %v1071, %v1070
  %v1187 = vpack.c.b16 %v1073, %v1072
  %v1188 = vpack.c.b16 %v1075, %v1074
  %v1189 = vpack.c.b16 %v1077, %v1076
  %v1190 = vpack.c.b16 %v1079, %v1078
  %v1191 = vpack.c.b16 %v1081, %v1080
  %v1192 = vpack.c.b16 %v1083, %v1082
  %v1193 = vpack.c.b16 %v1085, %v1084
  %v1194 = vpack.c.b16 %v1087, %v1086
  %v1195 = vpack.c.b16 %v1089, %v1088
  %v1196 = vpack.c.b16 %v1091, %v1090
  %v1197 = vpack.c.b16 %v1093, %v1092
  %v1198 = vpack.c.b16 %v1095, %v1094
  %v1199 = vpack.c.b16 %v1097, %v1096
  %v1200 = vpack.c.b16 %v1099, %v1098
  %v1201 = vpack.c.b16 %v1101, %v1100
  %v1202 = vpack.c.b16 %v1103, %v1102
  %v1203 = vpack.c.b16 %v1105, %v1104
  %v1204 = vpack.c.b16 %v1107, %v1106
  %v1205 = vpack.c.b16 %v1109, %v1108
  %v1206 = vpack.c.b16 %v1111, %v1110
  %v1207 = vpack.c.b16 %v1113, %v1112
  %v1208 = vpack.c.b16 %v1115, %v1114
  %v1209 = vpack.c.b16 %v1117, %v1116
  %v1210 = vpack.c.b16 %v1119, %v1118
  %v1211 = vpack.c.b16 %v1121, %v1120
  %v1212 = vpack.c.b16 %v1123, %v1122
  %v1213 = vpack.c.b16 %v1125, %v1124
  %v1214 = vpack.c.b16 %v1127, %v1126
  %v1215 = vpack.c.b16 %v1129, %v1128
  %v1216 = vpack.c.b16 %v1131, %v1130
  %v1217 = vpack.c.b16 %v1133, %v1132
  %v1218 = vpack.c.b16 %v1135, %v1134
  %v1219 = vpack.c.b16 %v1137, %v1136
  %v1220 = vpack.c.b16 %v1139, %v1138
  %v1221 = vpack.c.b16 %v1141, %v1140
  %v1222 = vpack.c.b16 %v1143, %v1142
  %v1223 = vpack.c.b16 %v1145, %v1144
  %v1224 = vpack.c.b16 %v1147, %v1146
  %v1225 = vpack.c.b16 %v1149, %v1148
  %v1226 = vpack.c.b16 %v1151, %v1150
  %v1227 = vpack.c.b16 %v1153, %v1152
  %v1228 = vpack.c.b16 %v1155, %v1154
  %v1229 = vpack.c.b16 %v1157, %v1156
  %v1230 = vpack.c.b16 %v1159, %v1158
  %v1231 = vpack.c.b16 %v1161, %v1160
  %v1232 = vpack.c.b16 %v1163, %v1162
  %v1233 = vpack.c.b16 %v1165, %v1164
  %1302 = vmatprep.subr.bf16.mxu0 0
  %1303 = vmatpush1.bf16.msra.mxu0 %v1166
  %1304 = vmatprep.subr.bf16.mxu0 0
  %1305 = vmatpush1.bf16.msra.mxu0 %v1167
  %1306 = vmatprep.subr.bf16.mxu0 0
  %1307 = vmatpush1.bf16.msra.mxu0 %v1168
  %1308 = vmatprep.subr.bf16.mxu0 0
  %1309 = vmatpush1.bf16.msra.mxu0 %v1169
  %1310 = vmatprep.subr.bf16.mxu0 0
  %1311 = vmatpush1.bf16.msra.mxu0 %v1170
  %1312 = vmatprep.subr.bf16.mxu0 0
  %1313 = vmatpush1.bf16.msra.mxu0 %v1171
  %1314 = vmatprep.subr.bf16.mxu0 0
  %1315 = vmatpush1.bf16.msra.mxu0 %v1172
  %1316 = vmatprep.subr.bf16.mxu0 0
  %1317 = vmatpush1.bf16.msra.mxu0 %v1173
  %1318 = vmatprep.subr.bf16.mxu0 0
  %1319 = vmatpush1.bf16.msra.mxu0 %v1174
  %1320 = vmatprep.subr.bf16.mxu0 0
  %1321 = vmatpush1.bf16.msra.mxu0 %v1175
  %1322 = vmatprep.subr.bf16.mxu0 0
  %1323 = vmatpush1.bf16.msra.mxu0 %v1176
  %1324 = vmatprep.subr.bf16.mxu0 0
  %1325 = vmatpush1.bf16.msra.mxu0 %v1177
  %1326 = vmatprep.subr.bf16.mxu0 0
  %1327 = vmatpush1.bf16.msra.mxu0 %v1178
  %1328 = vmatprep.subr.bf16.mxu0 0
  %1329 = vmatpush1.bf16.msra.mxu0 %v1179
  %1330 = vmatprep.subr.bf16.mxu0 0
  %1331 = vmatpush1.bf16.msra.mxu0 %v1180
  %1332 = vmatprep.subr.bf16.mxu0 0
  %1333 = vmatpush1.bf16.msra.mxu0 %v1181
  %1334 = vmatprep.mubr.bf16.mxu0 %v744
  %1335 = vmatmul.mubr.bf16.gmra.mrb[0].mxu0 %v743
  %v1336 = vpop.f32.mrb[0].mxu0
  %v1337 = vadd.f32 %v892, %v1336
  %v1338 = vpop.f32.mrb[0].mxu0
  %v1339 = vpop.f32.mrb[0].mxu0
  %v1340 = vpop.f32.mrb[0].mxu0
  %1341 = vdwg.mxu0
  %1342 = vmatprep.subr.bf16.mxu0 0
  %1343 = vmatpush1.bf16.msra.mxu0 %v1182
  %1344 = vmatprep.subr.bf16.mxu0 0
  %1345 = vmatpush1.bf16.msra.mxu0 %v1183
  %1346 = vmatprep.subr.bf16.mxu0 0
  %1347 = vmatpush1.bf16.msra.mxu0 %v1184
  %1348 = vmatprep.subr.bf16.mxu0 0
  %1349 = vmatpush1.bf16.msra.mxu0 %v1185
  %1350 = vmatprep.subr.bf16.mxu0 0
  %1351 = vmatpush1.bf16.msra.mxu0 %v1186
  %1352 = vmatprep.subr.bf16.mxu0 0
  %1353 = vmatpush1.bf16.msra.mxu0 %v1187
  %1354 = vmatprep.subr.bf16.mxu0 0
  %1355 = vmatpush1.bf16.msra.mxu0 %v1188
  %1356 = vmatprep.subr.bf16.mxu0 0
  %1357 = vmatpush1.bf16.msra.mxu0 %v1189
  %1358 = vmatprep.subr.bf16.mxu0 0
  %1359 = vmatpush1.bf16.msra.mxu0 %v1190
  %1360 = vmatprep.subr.bf16.mxu0 0
  %1361 = vmatpush1.bf16.msra.mxu0 %v1191
  %1362 = vmatprep.subr.bf16.mxu0 0
  %1363 = vmatpush1.bf16.msra.mxu0 %v1192
  %1364 = vmatprep.subr.bf16.mxu0 0
  %1365 = vmatpush1.bf16.msra.mxu0 %v1193
  %1366 = vmatprep.subr.bf16.mxu0 0
  %1367 = vmatpush1.bf16.msra.mxu0 %v1194
  %1368 = vmatprep.subr.bf16.mxu0 0
  %1369 = vmatpush1.bf16.msra.mxu0 %v1195
  %1370 = vmatprep.subr.bf16.mxu0 0
  %1371 = vmatpush1.bf16.msra.mxu0 %v1196
  %1372 = vmatprep.subr.bf16.mxu0 0
  %1373 = vmatpush1.bf16.msra.mxu0 %v1197
  %1374 = vmatprep.mubr.bf16.mxu0 %v746
  %1375 = vmatmul.mubr.bf16.gmra.mrb[0].mxu0 %v745
  %v1376 = vpop.f32.mrb[0].mxu0
  %v1377 = vadd.f32 %v1337, %v1376
  %v1378 = vpop.f32.mrb[0].mxu0
  %v1379 = vpop.f32.mrb[0].mxu0
  %v1380 = vpop.f32.mrb[0].mxu0
  %1381 = vdwg.mxu0
  %1382 = vmatprep.subr.bf16.mxu0 0
  %1383 = vmatpush1.bf16.msra.mxu0 %v1198
  %1384 = vmatprep.subr.bf16.mxu0 0
  %1385 = vmatpush1.bf16.msra.mxu0 %v1199
  %1386 = vmatprep.subr.bf16.mxu0 0
  %1387 = vmatpush1.bf16.msra.mxu0 %v1200
  %1388 = vmatprep.subr.bf16.mxu0 0
  %1389 = vmatpush1.bf16.msra.mxu0 %v1201
  %1390 = vmatprep.subr.bf16.mxu0 0
  %1391 = vmatpush1.bf16.msra.mxu0 %v1202
  %1392 = vmatprep.subr.bf16.mxu0 0
  %1393 = vmatpush1.bf16.msra.mxu0 %v1203
  %1394 = vmatprep.subr.bf16.mxu0 0
  %1395 = vmatpush1.bf16.msra.mxu0 %v1204
  %1396 = vmatprep.subr.bf16.mxu0 0
  %1397 = vmatpush1.bf16.msra.mxu0 %v1205
  %1398 = vmatprep.subr.bf16.mxu0 0
  %1399 = vmatpush1.bf16.msra.mxu0 %v1206
  %1400 = vmatprep.subr.bf16.mxu0 0
  %1401 = vmatpush1.bf16.msra.mxu0 %v1207
  %1402 = vmatprep.subr.bf16.mxu0 0
  %1403 = vmatpush1.bf16.msra.mxu0 %v1208
  %1404 = vmatprep.subr.bf16.mxu0 0
  %1405 = vmatpush1.bf16.msra.mxu0 %v1209
  %1406 = vmatprep.subr.bf16.mxu0 0
  %1407 = vmatpush1.bf16.msra.mxu0 %v1210
  %1408 = vmatprep.subr.bf16.mxu0 0
  %1409 = vmatpush1.bf16.msra.mxu0 %v1211
  %1410 = vmatprep.subr.bf16.mxu0 0
  %1411 = vmatpush1.bf16.msra.mxu0 %v1212
  %1412 = vmatprep.subr.bf16.mxu0 0
  %1413 = vmatpush1.bf16.msra.mxu0 %v1213
  %1414 = vmatprep.mubr.bf16.mxu0 %v748
  %1415 = vmatmul.mubr.bf16.gmra.mrb[0].mxu0 %v747
  %v1416 = vpop.f32.mrb[0].mxu0
  %v1417 = vadd.f32 %v1377, %v1416
  %v1418 = vpop.f32.mrb[0].mxu0
  %v1419 = vpop.f32.mrb[0].mxu0
  %v1420 = vpop.f32.mrb[0].mxu0
  %1421 = vdwg.mxu0
  %1422 = vmatprep.subr.bf16.mxu0 0
  %1423 = vmatpush1.bf16.msra.mxu0 %v1214
  %1424 = vmatprep.subr.bf16.mxu0 0
  %1425 = vmatpush1.bf16.msra.mxu0 %v1215
  %1426 = vmatprep.subr.bf16.mxu0 0
  %1427 = vmatpush1.bf16.msra.mxu0 %v1216
  %1428 = vmatprep.subr.bf16.mxu0 0
  %1429 = vmatpush1.bf16.msra.mxu0 %v1217
  %1430 = vmatprep.subr.bf16.mxu0 0
  %1431 = vmatpush1.bf16.msra.mxu0 %v1218
  %1432 = vmatprep.subr.bf16.mxu0 0
  %1433 = vmatpush1.bf16.msra.mxu0 %v1219
  %1434 = vmatprep.subr.bf16.mxu0 0
  %1435 = vmatpush1.bf16.msra.mxu0 %v1220
  %1436 = vmatprep.subr.bf16.mxu0 0
  %1437 = vmatpush1.bf16.msra.mxu0 %v1221
  %1438 = vmatprep.subr.bf16.mxu0 0
  %1439 = vmatpush1.bf16.msra.mxu0 %v1222
  %1440 = vmatprep.subr.bf16.mxu0 0
  %1441 = vmatpush1.bf16.msra.mxu0 %v1223
  %1442 = vmatprep.subr.bf16.mxu0 0
  %1443 = vmatpush1.bf16.msra.mxu0 %v1224
  %1444 = vmatprep.subr.bf16.mxu0 0
  %1445 = vmatpush1.bf16.msra.mxu0 %v1225
  %1446 = vmatprep.subr.bf16.mxu0 0
  %1447 = vmatpush1.bf16.msra.mxu0 %v1226
  %1448 = vmatprep.subr.bf16.mxu0 0
  %1449 = vmatpush1.bf16.msra.mxu0 %v1227
  %1450 = vmatprep.subr.bf16.mxu0 0
  %1451 = vmatpush1.bf16.msra.mxu0 %v1228
  %1452 = vmatprep.subr.bf16.mxu0 0
  %1453 = vmatpush1.bf16.msra.mxu0 %v1229
  %1454 = vmatprep.mubr.bf16.mxu0 %v750
  %1455 = vmatmul.mubr.bf16.gmra.mrb[0].mxu0 %v749
  %v1456 = vpop.f32.mrb[0].mxu0
  %v1457 = vadd.f32 %v1417, %v1456
  %v1458 = vpop.f32.mrb[0].mxu0
  %v1459 = vpop.f32.mrb[0].mxu0
  %v1460 = vpop.f32.mrb[0].mxu0
  %1461 = vdwg.mxu0
  %1462 = vmatprep.subr.bf16.mxu0 0
  %1463 = vmatpush1.bf16.msra.mxu0 %v1230
  %1464 = vmatprep.subr.bf16.mxu0 0
  %1465 = vmatpush1.bf16.msra.mxu0 %v1231
  %1466 = vmatprep.subr.bf16.mxu0 0
  %1467 = vmatpush1.bf16.msra.mxu0 %v1232
  %1468 = vmatprep.subr.bf16.mxu0 0
  %1469 = vmatpush1.bf16.msra.mxu0 %v1233
  %1470 = vmatprep.subr.bf16.mxu0 0
  %1471 = vmatpush1.bf16.msra.mxu0 0
  %1472 = vmatprep.subr.bf16.mxu0 0
  %1473 = vmatpush1.bf16.msra.mxu0 0
  %1474 = vmatprep.subr.bf16.mxu0 0
  %1475 = vmatpush1.bf16.msra.mxu0 0
  %1476 = vmatprep.subr.bf16.mxu0 0
  %1477 = vmatpush1.bf16.msra.mxu0 0
  %1478 = vmatprep.subr.bf16.mxu0 0
  %1479 = vmatpush1.bf16.msra.mxu0 0
  %1480 = vmatprep.subr.bf16.mxu0 0
  %1481 = vmatpush1.bf16.msra.mxu0 0
  %1482 = vmatprep.subr.bf16.mxu0 0
  %1483 = vmatpush1.bf16.msra.mxu0 0
  %1484 = vmatprep.subr.bf16.mxu0 0
  %1485 = vmatpush1.bf16.msra.mxu0 0
  %1486 = vmatprep.subr.bf16.mxu0 0
  %1487 = vmatpush1.bf16.msra.mxu0 0
  %1488 = vmatprep.subr.bf16.mxu0 0
  %1489 = vmatpush1.bf16.msra.mxu0 0
  %1490 = vmatprep.subr.bf16.mxu0 0
  %1491 = vmatpush1.bf16.msra.mxu0 0
  %1492 = vmatprep.subr.bf16.mxu0 0
  %1493 = vmatpush1.bf16.msra.mxu0 0
  %1494 = vmatprep.mubr.bf16.mxu0 0
  %1495 = vmatmul.mubr.bf16.gmra.mrb[0].mxu0 %v405
  %v1496 = vpop.f32.mrb[0].mxu0
  %v1497 = vadd.f32 %v1457, %v1496
  %v1498 = vpop.f32.mrb[0].mxu0
  %v1499 = vpop.f32.mrb[0].mxu0
  %v1500 = vpop.f32.mrb[0].mxu0
  %1501 = vdwg.mxu0
  %v1502 = vmax.f32 %v1497, 0.0
  %1503 = vst [vmem:[%s4] sm:$0xff] %v1502
  // Predicated region
  $region18: #{forward_batched.1} parent=0 // pred_check
    _
  $region19: #{forward_batched.1} parent=0 // pred_check_branch
    %1505 = sbr.rel (0) target = $region21
  $region20: #{forward_batched.1} parent=0 // pred_region
    _
  $region21: #{forward_batched.1} parent=0 // pred_fallthru
    _
  // Predicated region
  $region22: #{forward_batched.1} parent=0 // pred_check
    _
  $region23: #{forward_batched.1} parent=0 // pred_check_branch
    %1507 = sbr.rel (0) target = $region25
  $region24: #{forward_batched.1} parent=0 // pred_region
    _
  $region25: #{forward_batched.1} parent=0 // pred_fallthru
    _

</llo_original>
